<compile_context>
chip_gen: v5e
topology: v5e:2x2
jax: 0.10.0
libtpu: 0.0.40
codegen_flags: <defaults>
</compile_context>

<pallas_src>
import jax
import jax.numpy as jnp
from jax.experimental import pallas as pl
from jax.experimental.pallas import tpu as pltpu

_LANE = 128


def _round_up(n, m):
    return ((n + m - 1) // m) * m


def _pad_lanes(n):
    """Lane-dense padding: 128 for small channel counts, 256-multiples above
    128 (v6e/v7x MXUs are 256 wide; 128 is fine on v5e and below 128 chans)."""
    return _LANE if n <= _LANE else _round_up(n, 2 * _LANE)


def _forward_kernel(cols_ref, w1_ref, b1_ref, w2_ref, b2_ref, o_ref):
    """One row-tile of: conv-as-matmul + bias + ReLU + per-sample pool + head.

    cols_ref : (TB*HW, KP)   bf16  im2col activations (lane-dense, zero-padded K)
    w1_ref   : (KP, C1P)     bf16  conv weight as a matrix (zero-padded)
    b1_ref   : (1, C1P)      f32
    w2_ref   : (C1P, OUTP)   bf16  head weight, pre-scaled by 1/HW
    b2_ref   : (1, OUTP)     f32
    o_ref    : (1, TB, OUTP) f32   lane-dense output block for this tile
    """
    TB = o_ref.shape[1]
    HW = cols_ref.shape[0] // TB
    C1P = w1_ref.shape[1]
    OUTP = o_ref.shape[2]

    # Conv = single lane-dense MXU matmul, f32 accumulation.
    acc = jnp.dot(cols_ref[...], w1_ref[...],
                  preferred_element_type=jnp.float32)          # (TB*HW, C1P)

    # Bias + ReLU on the VPU (f32).
    h = jnp.maximum(acc + b1_ref[...], 0.0)

    # Per-sample global pool: sublane-aligned reshape + XLU sum.
    # (1/HW is folded into w2 in the wrapper.)
    pooled = jnp.sum(h.reshape(TB, HW, C1P), axis=1)           # (TB, C1P) f32

    # Linear head (bf16 MXU inputs, f32 accumulation) + bias; dense store.
    out = jnp.dot(pooled.astype(jnp.bfloat16), w2_ref[...],
                  preferred_element_type=jnp.float32) + b2_ref[...]
    o_ref[...] = out.reshape(1, TB, OUTP)


@jax.jit
def lgr_forward(x_nchw, conv_w, conv_b, fc_w, fc_b):
    """x_nchw: (B, Cin, H, W); conv_w: (C1, Cin, 3, 3); fc_w: (C1, OUT)."""
    B, Cin, H, W = x_nchw.shape
    C1 = conv_w.shape[0]
    OUT = fc_w.shape[1]
    HW = H * W
    K = 9 * Cin
    KP = _pad_lanes(K)
    C1P = _pad_lanes(C1)
    OUTP = _pad_lanes(OUT)

    # ---- samples per grid block: aim for >=256 rows per tile, but keep at
    # least 2 grid steps when B >= 2 so BlockSpec can double-buffer and v7x
    # can shard the "parallel" axis across its two TensorCores.
    TB = max(1, 512 // HW)
    if B >= 2:
        TB = min(TB, max(1, B // 2))
    TB = min(TB, B)
    num_blocks = -(-B // TB)
    B_pad = num_blocks * TB

    # ---- wrapper-side im2col: (B, HW, 9*Cin) lane-dense bf16 matrix.
    x_nhwc = jnp.transpose(x_nchw, (0, 2, 3, 1)).astype(jnp.float32)
    xp = jnp.pad(x_nhwc, ((0, 0), (1, 1), (1, 1), (0, 0)))
    patches = [xp[:, di:di + H, dj:dj + W, :]
               for di in range(3) for dj in range(3)]           # 9 x (B,H,W,Cin)
    cols = jnp.concatenate(patches, axis=-1).reshape(B, HW, K)  # (B, HW, 9*Cin)
    cols = jnp.pad(cols, ((0, B_pad - B), (0, 0), (0, KP - K)))
    cols = cols.reshape(B_pad * HW, KP).astype(jnp.bfloat16)

    # ---- weights: conv as (9*Cin, C1) matrix (tap-major, matching im2col),
    # head pre-scaled by 1/HW, all zero-padded to lane-dense shapes.
    w1 = jnp.transpose(conv_w, (2, 3, 1, 0)).reshape(K, C1)
    w1p = jnp.pad(w1, ((0, KP - K), (0, C1P - C1))).astype(jnp.bfloat16)
    b1p = jnp.pad(conv_b.reshape(1, C1),
                  ((0, 0), (0, C1P - C1))).astype(jnp.float32)
    w2p = jnp.pad(fc_w * (1.0 / HW),
                  ((0, C1P - C1), (0, OUTP - OUT))).astype(jnp.bfloat16)
    b2p = jnp.pad(fc_b.reshape(1, OUT),
                  ((0, 0), (0, OUTP - OUT))).astype(jnp.float32)

    flops = (2 * B_pad * HW * KP * C1P        # conv matmul
             + 2 * B_pad * C1P * OUTP)        # head matmul
    bytes_accessed = (cols.size * 2 + w1p.size * 2 + w2p.size * 2
                      + (b1p.size + b2p.size + num_blocks * TB * OUTP) * 4)

    out = pl.pallas_call(
        _forward_kernel,
        out_shape=jax.ShapeDtypeStruct((num_blocks, TB, OUTP), jnp.float32),
        grid=(num_blocks,),
        in_specs=[
            pl.BlockSpec((TB * HW, KP), lambda i: (i, 0)),
            pl.BlockSpec((KP, C1P), lambda i: (0, 0)),
            pl.BlockSpec((1, C1P), lambda i: (0, 0)),
            pl.BlockSpec((C1P, OUTP), lambda i: (0, 0)),
            pl.BlockSpec((1, OUTP), lambda i: (0, 0)),
        ],
        out_specs=pl.BlockSpec((1, TB, OUTP), lambda i: (i, 0, 0)),
        cost_estimate=pl.CostEstimate(flops=flops, transcendentals=0,
                                      bytes_accessed=bytes_accessed),
        compiler_params=pltpu.CompilerParams(
            dimension_semantics=("parallel",),
            vmem_limit_bytes=32 * 1024 * 1024),
    )(cols, w1p, b1p, w2p, b2p)

    return out.reshape(B_pad, OUTP)[:B, :OUT]


def _reference_forward(x_nchw, conv_w, conv_b, fc_w, fc_b):
    """Pure-JAX reference following the same dtype path (bf16 MXU inputs,
    f32 accumulation, 1/HW folded into the head weight)."""
    B, Cin, H, W = x_nchw.shape
    C1 = conv_w.shape[0]
    HW = H * W
    K = 9 * Cin
    x_nhwc = jnp.transpose(x_nchw, (0, 2, 3, 1)).astype(jnp.float32)
    xp = jnp.pad(x_nhwc, ((0, 0), (1, 1), (1, 1), (0, 0)))
    patches = [xp[:, di:di + H, dj:dj + W, :]
               for di in range(3) for dj in range(3)]
    cols = jnp.concatenate(patches, axis=-1).reshape(B, HW, K).astype(jnp.bfloat16)
    w1 = jnp.transpose(conv_w, (2, 3, 1, 0)).reshape(K, C1).astype(jnp.bfloat16)
    acc = jnp.einsum('bmk,kc->bmc', cols, w1,
                     preferred_element_type=jnp.float32)
    h = jnp.maximum(acc + conv_b[None, None, :], 0.0)           # (B, HW, C1)
    pooled = jnp.sum(h, axis=1)                                 # (B, C1)
    w2 = (fc_w * (1.0 / HW)).astype(jnp.bfloat16)
    return (pooled.astype(jnp.bfloat16) @ w2).astype(jnp.float32) + fc_b[None, :]


if __name__ == "__main__":
    B, Cin, H, W = 2, 4, 16, 16
    C1, OUT = 16, 8

    key = jax.random.PRNGKey(0)
    kx, kw1, kb1, kw2, kb2 = jax.random.split(key, 5)

    x = jax.random.normal(kx, (B, Cin, H, W), dtype=jnp.float32)
    conv_w = jax.random.normal(kw1, (C1, Cin, 3, 3), dtype=jnp.float32) * 0.1
    conv_b = jax.random.normal(kb1, (C1,), dtype=jnp.float32) * 0.01
    fc_w = jax.random.normal(kw2, (C1, OUT), dtype=jnp.float32) * 0.1
    fc_b = jax.random.normal(kb2, (OUT,), dtype=jnp.float32) * 0.01

    out = lgr_forward(x, conv_w, conv_b, fc_w, fc_b)
    out = jax.block_until_ready(out)

    ref = _reference_forward(x, conv_w, conv_b, fc_w, fc_b)
    assert out.shape == (B, OUT)
    # Tolerance covers bf16 MXU-input rounding / accumulation-order deltas.
    assert jnp.allclose(out, ref, atol=5e-3, rtol=5e-2), "mismatch vs reference"

    print("KERNEL_OK")
</pallas_src>

<mosaic_0001>
module attributes {stable_mosaic.version = 11 : i64} {
  func.func @_forward_kernel(%arg0: i32, %arg1: memref<256x128xbf16, #tpu.memory_space<vmem>>, %arg2: memref<128x128xbf16, #tpu.memory_space<vmem>>, %arg3: memref<1x128xf32, #tpu.memory_space<vmem>>, %arg4: memref<128x128xbf16, #tpu.memory_space<vmem>>, %arg5: memref<1x128xf32, #tpu.memory_space<vmem>>, %arg6: memref<1x1x128xf32, #tpu.memory_space<vmem>>) attributes {dimension_semantics = [#tpu.dimension_semantics<parallel>], iteration_bounds = array<i64: 2>, scalar_prefetch = 0 : i64, scratch_operands = 0 : i64, tpu.core_type = #tpu.core_type<tc>, window_params = [{transform_indices = @transform_0, window_bounds = array<i64: 256, 128>}, {pipeline_mode = #tpu.pipeline_mode<synchronous>, transform_indices = @transform_1, window_bounds = array<i64: 128, 128>}, {pipeline_mode = #tpu.pipeline_mode<synchronous>, transform_indices = @transform_2, window_bounds = array<i64: 1, 128>}, {pipeline_mode = #tpu.pipeline_mode<synchronous>, transform_indices = @transform_3, window_bounds = array<i64: 128, 128>}, {pipeline_mode = #tpu.pipeline_mode<synchronous>, transform_indices = @transform_4, window_bounds = array<i64: 1, 128>}, {transform_indices = @transform_5, window_bounds = array<i64: 1, 1, 128>}]} {
    %c0 = arith.constant 0 : index
    %c0_0 = arith.constant 0 : index
    %0 = vector.load %arg1[%c0, %c0_0] : memref<256x128xbf16, #tpu.memory_space<vmem>>, vector<256x128xbf16>
    %c0_1 = arith.constant 0 : index
    %c0_2 = arith.constant 0 : index
    %1 = vector.load %arg2[%c0_1, %c0_2] : memref<128x128xbf16, #tpu.memory_space<vmem>>, vector<128x128xbf16>
    %cst = arith.constant dense<0.000000e+00> : vector<256x128xf32>
    %2 = tpu.matmul %0, %1, %cst {dimension_numbers = #tpu.dot_dimension_numbers<[1], [0], [0], [1], [0, 0, 1, 1], [], []>} : vector<256x128xbf16>, vector<128x128xbf16>, vector<256x128xf32> -> vector<256x128xf32>
    %c0_3 = arith.constant 0 : index
    %c0_4 = arith.constant 0 : index
    %3 = vector.load %arg3[%c0_3, %c0_4] : memref<1x128xf32, #tpu.memory_space<vmem>>, vector<1x128xf32>
    %4 = vector.broadcast %3 : vector<1x128xf32> to vector<256x128xf32>
    %5 = arith.addf %2, %4 : vector<256x128xf32>
    %cst_5 = arith.constant 0.000000e+00 : f32
    %6 = vector.broadcast %cst_5 : f32 to vector<256x128xf32>
    %7 = arith.maximumf %5, %6 : vector<256x128xf32>
    %8 = vector.shape_cast %7 : vector<256x128xf32> to vector<1x256x128xf32>
    %cst_6 = arith.constant dense<0.000000e+00> : vector<1x128xf32>
    %9 = vector.multi_reduction <add>, %8, %cst_6 [1] : vector<1x256x128xf32> to vector<1x128xf32>
    %10 = arith.truncf %9 : vector<1x128xf32> to vector<1x128xbf16>
    %c0_7 = arith.constant 0 : index
    %c0_8 = arith.constant 0 : index
    %11 = vector.load %arg4[%c0_7, %c0_8] : memref<128x128xbf16, #tpu.memory_space<vmem>>, vector<128x128xbf16>
    %cst_9 = arith.constant dense<0.000000e+00> : vector<1x128xf32>
    %12 = tpu.matmul %10, %11, %cst_9 {dimension_numbers = #tpu.dot_dimension_numbers<[1], [0], [0], [1], [0, 0, 1, 1], [], []>} : vector<1x128xbf16>, vector<128x128xbf16>, vector<1x128xf32> -> vector<1x128xf32>
    %c0_10 = arith.constant 0 : index
    %c0_11 = arith.constant 0 : index
    %13 = vector.load %arg5[%c0_10, %c0_11] : memref<1x128xf32, #tpu.memory_space<vmem>>, vector<1x128xf32>
    %14 = arith.addf %12, %13 : vector<1x128xf32>
    %15 = vector.shape_cast %14 : vector<1x128xf32> to vector<1x1x128xf32>
    %c0_12 = arith.constant 0 : index
    %c0_13 = arith.constant 0 : index
    %c0_14 = arith.constant 0 : index
    %16 = vector.load %arg6[%c0_12, %c0_13, %c0_14] : memref<1x1x128xf32, #tpu.memory_space<vmem>>, vector<1x1x128xf32>
    tpu.vector_store %arg6[%c0_12, %c0_13, %c0_14], %15 {strides = array<i32>} : memref<1x1x128xf32, #tpu.memory_space<vmem>>, vector<1x1x128xf32>,
    return
  }
  func.func @transform_0(%arg0: i32) -> (i32, i32) {
    %c0_i32 = arith.constant 0 : i32
    %c0_i32_0 = arith.constant 0 : i32
    return %arg0, %c0_i32 : i32, i32
  }
  func.func @transform_1(%arg0: i32) -> (i32, i32) {
    %c0_i32 = arith.constant 0 : i32
    %c0_i32_0 = arith.constant 0 : i32
    %c0_i32_1 = arith.constant 0 : i32
    return %c0_i32, %c0_i32_0 : i32, i32
  }
  func.func @transform_2(%arg0: i32) -> (i32, i32) {
    %c0_i32 = arith.constant 0 : i32
    %c0_i32_0 = arith.constant 0 : i32
    %c0_i32_1 = arith.constant 0 : i32
    return %c0_i32, %c0_i32_0 : i32, i32
  }
  func.func @transform_3(%arg0: i32) -> (i32, i32) {
    %c0_i32 = arith.constant 0 : i32
    %c0_i32_0 = arith.constant 0 : i32
    %c0_i32_1 = arith.constant 0 : i32
    return %c0_i32, %c0_i32_0 : i32, i32
  }
  func.func @transform_4(%arg0: i32) -> (i32, i32) {
    %c0_i32 = arith.constant 0 : i32
    %c0_i32_0 = arith.constant 0 : i32
    %c0_i32_1 = arith.constant 0 : i32
    return %c0_i32, %c0_i32_0 : i32, i32
  }
  func.func @transform_5(%arg0: i32) -> (i32, i32, i32) {
    %c0_i32 = arith.constant 0 : i32
    %c0_i32_0 = arith.constant 0 : i32
    %c0_i32_1 = arith.constant 0 : i32
    return %arg0, %c0_i32, %c0_i32_0 : i32, i32, i32
  }
}

</mosaic_0001>

<llo_original>
// kernel: lgr_forward.1
$region0: #{lgr_forward.1}
  #allocation0 [shape = 'u32[]', space=smem, size = 0x4, offset = 0x4, fixed_abs, tag = 'smem constant byte address 0x4 - core index']
  #allocation1 [shape = 'u32[72,128]{1,0:T(1,128)}', space=vmem, size = 0x9000, scoped, tag = 'internal scratch']
  %s0 = inlined_call_operand.vmem [shape: bf16[512,128], index: 0, kind: input, shape index: {}]
  %s1 = inlined_call_operand.vmem [shape: bf16[128,128], index: 1, kind: input, shape index: {}]
  %s2 = inlined_call_operand.vmem [shape: f32[1,128], index: 2, kind: input, shape index: {}]
  %s3 = inlined_call_operand.vmem [shape: bf16[128,128], index: 3, kind: input, shape index: {}]
  %s4 = inlined_call_operand.vmem [shape: f32[1,128], index: 4, kind: input, shape index: {}]
  %s5 = inlined_call_operand.hbm [shape: f32[2,1,128], index: 5, kind: output, shape index: {}]
  %s6 = sld [smem:[#allocation0]]
  $region53: #{lgr_forward.1} parent=0
    _
  %s8 = ssub.s32 1, %s6
  %s9 = scalar_select 0, %s8, %s6
  $region1: #{lgr_forward.1} parent=0
    #allocation2 [shape = 'u8[1024]{0}', space=vmem, size = 0x400, scoped, tag = 'output window, operand 0']
    #allocation3 [shape = 's32[2]{0}', space=sflag, size = 0x8, scoped, tag = 'scoped memory for lgr_forward.1']
    %10 = vsyncpa [#allocation3], 0
    %s11 = scalar_lea.sflag [#allocation3], 1
    %12 = vsyncpa %s11, 0
    loop: start=0, step=1, limit=4
    $region2: #{lgr_forward.1} parent=1 // loop_pre_header
      _
    $region3: #{lgr_forward.1} parent=1 // loop_header
      %s14 = sphi 0, %s18
      %p15 = scmp.ge.s32.totalorder %s14, 4
      %s24 = sphi 0, %s26
      %s27 = sphi 0, %s24
      %s28 = sphi 0, %s27
      %s44 = sphi 0, %s28
      %s48 = sphi 0, %s48
      %s50 = sphi 0, %s48
      %s51 = sphi 0, %s50
      %s65 = sphi 0, %s51
      %s69 = sphi 0, %s69
      %s71 = sphi 0, %s69
      %s72 = sphi 0, %s71
      %s86 = sphi 0, %s72
      %s90 = sphi 0, %s90
      %s92 = sphi 0, %s90
      %s93 = sphi 0, %s92
      %s107 = sphi 0, %s93
      %s111 = sphi 0, %s111
      %s113 = sphi 0, %s111
      %s114 = sphi 0, %s113
      %s128 = sphi 0, %s114
      %s134 = sphi 0, %s136
      %s137 = sphi 0, %s134
      %s138 = sphi 0, %s137
      %s154 = sphi 0, %s138
    $region4: #{lgr_forward.1} parent=1 // loop_header_branch
      %17 = sbr.rel (%p15) target = $region8
    $region5: #{lgr_forward.1} parent=1 // loop_body
      %s19 = ssub.s32 %s14, 1
      %s20 = ssub.s32 %s14, 2
      %s21 = sadd.s32 %s14, 1
      %s22 = ssub.s32 %s14, %s21
      %p23 = scmp.eq.s32.totalorder %s22, 0
      %s25 = sadd.s32 %s24, 1
      %s26 = scalar_select %p23, %s24, %s25
      %p29 = pneg %p23
      %p30 = scmp.eq.s32.totalorder %s14, 1
      %p31 = por %p29, %p30
      %p32 = scmp.ne.s32.totalorder %s24, %s27
      %p33 = scmp.eq.s32.totalorder %s14, 0
      %p34 = por %p32, %p33
      %p35 = scmp.ne.s32.totalorder %s24, %s27
      %p36 = scmp.eq.s32.totalorder %s19, 1
      %p37 = por %p35, %p36
      %p38 = scmp.ne.s32.totalorder %s27, %s28
      %p39 = scmp.eq.s32.totalorder %s19, 0
      %p40 = por %p38, %p39
      %p41 = scmp.ne.s32.totalorder %s27, %s28
      %p42 = scmp.eq.s32.totalorder %s20, 1
      %p43 = por %p41, %p42
      %p45 = scmp.ne.s32.totalorder %s28, %s44
      %p46 = scmp.eq.s32.totalorder %s20, 0
      %p47 = por %p45, %p46
      %s49 = sadd.s32 %s48, 1
      %p52 = scmp.eq.s32.totalorder %s14, 1
      %p53 = scmp.ne.s32.totalorder %s48, %s50
      %p54 = scmp.eq.s32.totalorder %s14, 0
      %p55 = por %p53, %p54
      %p56 = scmp.ne.s32.totalorder %s48, %s50
      %p57 = scmp.eq.s32.totalorder %s19, 1
      %p58 = por %p56, %p57
      %p59 = scmp.ne.s32.totalorder %s50, %s51
      %p60 = scmp.eq.s32.totalorder %s19, 0
      %p61 = por %p59, %p60
      %p62 = scmp.ne.s32.totalorder %s50, %s51
      %p63 = scmp.eq.s32.totalorder %s20, 1
      %p64 = por %p62, %p63
      %p66 = scmp.ne.s32.totalorder %s51, %s65
      %p67 = scmp.eq.s32.totalorder %s20, 0
      %p68 = por %p66, %p67
      %s70 = sadd.s32 %s69, 1
      %p73 = scmp.eq.s32.totalorder %s14, 1
      %p74 = scmp.ne.s32.totalorder %s69, %s71
      %p75 = scmp.eq.s32.totalorder %s14, 0
      %p76 = por %p74, %p75
      %p77 = scmp.ne.s32.totalorder %s69, %s71
      %p78 = scmp.eq.s32.totalorder %s19, 1
      %p79 = por %p77, %p78
      %p80 = scmp.ne.s32.totalorder %s71, %s72
      %p81 = scmp.eq.s32.totalorder %s19, 0
      %p82 = por %p80, %p81
      %p83 = scmp.ne.s32.totalorder %s71, %s72
      %p84 = scmp.eq.s32.totalorder %s20, 1
      %p85 = por %p83, %p84
      %p87 = scmp.ne.s32.totalorder %s72, %s86
      %p88 = scmp.eq.s32.totalorder %s20, 0
      %p89 = por %p87, %p88
      %s91 = sadd.s32 %s90, 1
      %p94 = scmp.eq.s32.totalorder %s14, 1
      %p95 = scmp.ne.s32.totalorder %s90, %s92
      %p96 = scmp.eq.s32.totalorder %s14, 0
      %p97 = por %p95, %p96
      %p98 = scmp.ne.s32.totalorder %s90, %s92
      %p99 = scmp.eq.s32.totalorder %s19, 1
      %p100 = por %p98, %p99
      %p101 = scmp.ne.s32.totalorder %s92, %s93
      %p102 = scmp.eq.s32.totalorder %s19, 0
      %p103 = por %p101, %p102
      %p104 = scmp.ne.s32.totalorder %s92, %s93
      %p105 = scmp.eq.s32.totalorder %s20, 1
      %p106 = por %p104, %p105
      %p108 = scmp.ne.s32.totalorder %s93, %s107
      %p109 = scmp.eq.s32.totalorder %s20, 0
      %p110 = por %p108, %p109
      %s112 = sadd.s32 %s111, 1
      %p115 = scmp.eq.s32.totalorder %s14, 1
      %p116 = scmp.ne.s32.totalorder %s111, %s113
      %p117 = scmp.eq.s32.totalorder %s14, 0
      %p118 = por %p116, %p117
      %p119 = scmp.ne.s32.totalorder %s111, %s113
      %p120 = scmp.eq.s32.totalorder %s19, 1
      %p121 = por %p119, %p120
      %p122 = scmp.ne.s32.totalorder %s113, %s114
      %p123 = scmp.eq.s32.totalorder %s19, 0
      %p124 = por %p122, %p123
      %p125 = scmp.ne.s32.totalorder %s113, %s114
      %p126 = scmp.eq.s32.totalorder %s20, 1
      %p127 = por %p125, %p126
      %p129 = scmp.ne.s32.totalorder %s114, %s128
      %p130 = scmp.eq.s32.totalorder %s20, 0
      %p131 = por %p129, %p130
      %s132 = ssub.s32 %s14, %s21
      %p133 = scmp.eq.s32.totalorder %s132, 0
      %s135 = sadd.s32 %s134, 1
      %s136 = scalar_select %p133, %s134, %s135
      %p139 = pneg %p133
      %p140 = scmp.eq.s32.totalorder %s14, 1
      %p141 = por %p139, %p140
      %p142 = scmp.ne.s32.totalorder %s134, %s137
      %p143 = scmp.eq.s32.totalorder %s14, 0
      %p144 = por %p142, %p143
      %p145 = scmp.ne.s32.totalorder %s134, %s137
      %p146 = scmp.eq.s32.totalorder %s19, 1
      %p147 = por %p145, %p146
      %p148 = scmp.ne.s32.totalorder %s137, %s138
      %p149 = scmp.eq.s32.totalorder %s19, 0
      %p150 = por %p148, %p149
      %p151 = scmp.ne.s32.totalorder %s137, %s138
      %p152 = scmp.eq.s32.totalorder %s20, 1
      %p153 = por %p151, %p152
      %p155 = scmp.ne.s32.totalorder %s138, %s154
      %p156 = scmp.eq.s32.totalorder %s20, 0
      %p157 = por %p155, %p156
      %p158 = scmp.le.s32.totalorder 1, %s14
      %p159 = scmp.lt.s32.totalorder %s14, 3
      %p160 = pnand %p158, %p159
      %p161 = pneg %p160
      // Predicated region
      $region9: #{lgr_forward.1} parent=5 // pred_check
        _
      $region10: #{lgr_forward.1} parent=5 // pred_check_branch
        %163 = sbr.rel (%p160) target = $region12
      $region11: #{lgr_forward.1} parent=5 // pred_region
        %s164 = ssub.s32 %s14, 1
        // Predicated region
        $region13: #{lgr_forward.1} parent=11 // pred_check
          %p165 = pneg %p61
        $region14: #{lgr_forward.1} parent=11 // pred_check_branch
          %167 = sbr.rel (%p165) target = $region16
        $region15: #{lgr_forward.1} parent=11 // pred_region
          _
        $region16: #{lgr_forward.1} parent=11 // pred_fallthru
          _
        // Predicated region
        $region17: #{lgr_forward.1} parent=11 // pred_check
          %p168 = pneg %p82
        $region18: #{lgr_forward.1} parent=11 // pred_check_branch
          %170 = sbr.rel (%p168) target = $region20
        $region19: #{lgr_forward.1} parent=11 // pred_region
          _
        $region20: #{lgr_forward.1} parent=11 // pred_fallthru
          _
        // Predicated region
        $region21: #{lgr_forward.1} parent=11 // pred_check
          %p171 = pneg %p103
        $region22: #{lgr_forward.1} parent=11 // pred_check_branch
          %173 = sbr.rel (%p171) target = $region24
        $region23: #{lgr_forward.1} parent=11 // pred_region
          _
        $region24: #{lgr_forward.1} parent=11 // pred_fallthru
          _
        // Predicated region
        $region25: #{lgr_forward.1} parent=11 // pred_check
          %p174 = pneg %p124
        $region26: #{lgr_forward.1} parent=11 // pred_check_branch
          %176 = sbr.rel (%p174) target = $region28
        $region27: #{lgr_forward.1} parent=11 // pred_region
          _
        $region28: #{lgr_forward.1} parent=11 // pred_fallthru
          _
      $region12: #{lgr_forward.1} parent=5 // pred_fallthru
        _
      %p177 = scmp.lt.s32.totalorder %s14, 2
      // Predicated region
      $region29: #{lgr_forward.1} parent=5 // pred_check
        %p178 = pneg %p177
      $region30: #{lgr_forward.1} parent=5 // pred_check_branch
        %180 = sbr.rel (%p178) target = $region32
      $region31: #{lgr_forward.1} parent=5 // pred_region
        // Predicated region
        $region33: #{lgr_forward.1} parent=31 // pred_check
          %p181 = pneg %p34
        $region34: #{lgr_forward.1} parent=31 // pred_check_branch
          %183 = sbr.rel (%p181) target = $region36
        $region35: #{lgr_forward.1} parent=31 // pred_region
          %s184 = smul.u32 32, %s14
          %p185 = scmp.lt.s32.totalorder %s184, 63
          %s186 = scalar_select %p185, %s184, 63
          %s187 = smul.addr %s186, 4
          %s188 = scalar_lea.vmem %s0, %s187
          %s189 = smul.u32 32, %s14
        $region36: #{lgr_forward.1} parent=31 // pred_fallthru
          _
      $region32: #{lgr_forward.1} parent=5 // pred_fallthru
        _
      %p190 = scmp.le.s32.totalorder 1, %s14
      %p191 = scmp.lt.s32.totalorder %s14, 3
      %p192 = pnand %p190, %p191
      %p193 = pneg %p192
      // Predicated region
      $region37: #{lgr_forward.1} parent=5 // pred_check
        _
      $region38: #{lgr_forward.1} parent=5 // pred_check_branch
        %195 = sbr.rel (%p192) target = $region40
      $region39: #{lgr_forward.1} parent=5 // pred_region
        %s196 = ssub.s32 %s14, 1
        %s197 = smul.u32 32, %s19
        %p198 = scmp.lt.s32.totalorder %s197, 63
        %s199 = scalar_select %p198, %s197, 63
        %s200 = smul.addr %s199, 4
        %s201 = scalar_lea.vmem %s0, %s200
        %p202 = pneg %p40
        %p203 = pneg %p37
        %p204 = pneg %p61
        %p205 = pneg %p58
        %p206 = pneg %p82
        %p207 = pneg %p79
        %p208 = pneg %p103
        %p209 = pneg %p100
        %p210 = pneg %p124
        %p211 = pneg %p121
        %p212 = pneg %p150
        %p213 = pneg %p147
        %s214 = sand.u32 %s137, 1
        %s215 = scalar_lea.sflag [#allocation3], %s214
        %s216 = sand.u32 %s137, 1
        %s217 = scalar_lea.vmem [#allocation2], %s216
        %s218 = smul.u32 32, %s19
        %p219 = scmp.lt.s32.totalorder %s218, 63
        %s220 = scalar_select %p219, %s218, 63
        %s221 = smul.addr %s220, 4
        %s222 = scalar_lea.vmem %s0, %s221
        %s223 = smul.u32 32, %s19
        %v224 = vld [vmem:[%s222] sm:$0xf]
        %v225 = vld [vmem:[%s222 + $0x4] sm:$0xf]
        %v226 = vld [vmem:[%s222 + $0x8] sm:$0xf]
        %v227 = vld [vmem:[%s222 + $0xc] sm:$0xf]
        %v228 = vld [vmem:[%s222 + $0x10] sm:$0xf]
        %v229 = vld [vmem:[%s222 + $0x14] sm:$0xf]
        %v230 = vld [vmem:[%s222 + $0x18] sm:$0xf]
        %v231 = vld [vmem:[%s222 + $0x1c] sm:$0xf]
        %v232 = vld [vmem:[%s222 + $0x20] sm:$0xf]
        %v233 = vld [vmem:[%s222 + $0x24] sm:$0xf]
        %v234 = vld [vmem:[%s222 + $0x28] sm:$0xf]
        %v235 = vld [vmem:[%s222 + $0x2c] sm:$0xf]
        %v236 = vld [vmem:[%s222 + $0x30] sm:$0xf]
        %v237 = vld [vmem:[%s222 + $0x34] sm:$0xf]
        %v238 = vld [vmem:[%s222 + $0x38] sm:$0xf]
        %v239 = vld [vmem:[%s222 + $0x3c] sm:$0xf]
        %v240 = vld [vmem:[%s222 + $0x40] sm:$0xf]
        %v241 = vld [vmem:[%s222 + $0x44] sm:$0xf]
        %v242 = vld [vmem:[%s222 + $0x48] sm:$0xf]
        %v243 = vld [vmem:[%s222 + $0x4c] sm:$0xf]
        %v244 = vld [vmem:[%s222 + $0x50] sm:$0xf]
        %v245 = vld [vmem:[%s222 + $0x54] sm:$0xf]
        %v246 = vld [vmem:[%s222 + $0x58] sm:$0xf]
        %v247 = vld [vmem:[%s222 + $0x5c] sm:$0xf]
        %v248 = vld [vmem:[%s222 + $0x60] sm:$0xf]
        %v249 = vld [vmem:[%s222 + $0x64] sm:$0xf]
        %v250 = vld [vmem:[%s222 + $0x68] sm:$0xf]
        %v251 = vld [vmem:[%s222 + $0x6c] sm:$0xf]
        %v252 = vld [vmem:[%s222 + $0x70] sm:$0xf]
        %v253 = vld [vmem:[%s222 + $0x74] sm:$0xf]
        %v254 = vld [vmem:[%s222 + $0x78] sm:$0xf]
        %v255 = vld [vmem:[%s222 + $0x7c] sm:$0xf]
        %v256 = vld [vmem:[%s1] sm:$0xf]
        %v257 = vld [vmem:[%s1 + $0x4] sm:$0xf]
        %v258 = vld [vmem:[%s1 + $0x8] sm:$0xf]
        %v259 = vld [vmem:[%s1 + $0xc] sm:$0xf]
        %v260 = vld [vmem:[%s1 + $0x10] sm:$0xf]
        %v261 = vld [vmem:[%s1 + $0x14] sm:$0xf]
        %v262 = vld [vmem:[%s1 + $0x18] sm:$0xf]
        %v263 = vld [vmem:[%s1 + $0x1c] sm:$0xf]
        %v264 = vld [vmem:[%s1 + $0x20] sm:$0xf]
        %v265 = vld [vmem:[%s1 + $0x24] sm:$0xf]
        %v266 = vld [vmem:[%s1 + $0x28] sm:$0xf]
        %v267 = vld [vmem:[%s1 + $0x2c] sm:$0xf]
        %v268 = vld [vmem:[%s1 + $0x30] sm:$0xf]
        %v269 = vld [vmem:[%s1 + $0x34] sm:$0xf]
        %v270 = vld [vmem:[%s1 + $0x38] sm:$0xf]
        %v271 = vld [vmem:[%s1 + $0x3c] sm:$0xf]
        %v272 = vld [vmem:[%s2] sm:$0x1]
        %v274 = vperm.slane %v272, 0
        %v308 = vunpack.c.l.b16 %v224
        %v309 = vunpack.c.l.b16 %v225
        %v310 = vunpack.c.l.b16 %v226
        %v311 = vunpack.c.l.b16 %v227
        %v312 = vunpack.c.l.b16 %v228
        %v313 = vunpack.c.l.b16 %v229
        %v314 = vunpack.c.l.b16 %v230
        %v315 = vunpack.c.l.b16 %v231
        %v316 = vunpack.c.l.b16 %v232
        %v317 = vunpack.c.l.b16 %v233
        %v318 = vunpack.c.l.b16 %v234
        %v319 = vunpack.c.l.b16 %v235
        %v320 = vunpack.c.l.b16 %v236
        %v321 = vunpack.c.l.b16 %v237
        %v322 = vunpack.c.l.b16 %v238
        %v323 = vunpack.c.l.b16 %v239
        %v324 = vunpack.c.l.b16 %v240
        %v325 = vunpack.c.l.b16 %v241
        %v326 = vunpack.c.l.b16 %v242
        %v327 = vunpack.c.l.b16 %v243
        %v328 = vunpack.c.l.b16 %v244
        %v329 = vunpack.c.l.b16 %v245
        %v330 = vunpack.c.l.b16 %v246
        %v331 = vunpack.c.l.b16 %v247
        %v332 = vunpack.c.l.b16 %v248
        %v333 = vunpack.c.l.b16 %v249
        %v334 = vunpack.c.l.b16 %v250
        %v335 = vunpack.c.l.b16 %v251
        %v336 = vunpack.c.l.b16 %v252
        %v337 = vunpack.c.l.b16 %v253
        %v338 = vunpack.c.l.b16 %v254
        %v339 = vunpack.c.l.b16 %v255
        %v340 = vpack.c.b16 %v309, %v308
        %v341 = vpack.c.b16 %v311, %v310
        %v342 = vpack.c.b16 %v313, %v312
        %v343 = vpack.c.b16 %v315, %v314
        %v344 = vpack.c.b16 %v317, %v316
        %v345 = vpack.c.b16 %v319, %v318
        %v346 = vpack.c.b16 %v321, %v320
        %v347 = vpack.c.b16 %v323, %v322
        %v348 = vpack.c.b16 %v325, %v324
        %v349 = vpack.c.b16 %v327, %v326
        %v350 = vpack.c.b16 %v329, %v328
        %v351 = vpack.c.b16 %v331, %v330
        %v352 = vpack.c.b16 %v333, %v332
        %v353 = vpack.c.b16 %v335, %v334
        %v354 = vpack.c.b16 %v337, %v336
        %v355 = vpack.c.b16 %v339, %v338
        %v388 = vunpack.c.l.b16 %v256
        %v389 = vunpack.c.l.b16 %v257
        %v390 = vunpack.c.l.b16 %v258
        %v391 = vunpack.c.l.b16 %v259
        %v392 = vunpack.c.l.b16 %v260
        %v393 = vunpack.c.l.b16 %v261
        %v394 = vunpack.c.l.b16 %v262
        %v395 = vunpack.c.l.b16 %v263
        %v396 = vunpack.c.l.b16 %v264
        %v397 = vunpack.c.l.b16 %v265
        %v398 = vunpack.c.l.b16 %v266
        %v399 = vunpack.c.l.b16 %v267
        %v400 = vunpack.c.l.b16 %v268
        %v401 = vunpack.c.l.b16 %v269
        %v402 = vunpack.c.l.b16 %v270
        %v403 = vunpack.c.l.b16 %v271
        %v404 = vpack.c.b16 %v389, %v388
        %v405 = vpack.c.b16 %v391, %v390
        %v406 = vpack.c.b16 %v393, %v392
        %v407 = vpack.c.b16 %v395, %v394
        %v408 = vpack.c.b16 %v397, %v396
        %v409 = vpack.c.b16 %v399, %v398
        %v410 = vpack.c.b16 %v401, %v400
        %v411 = vpack.c.b16 %v403, %v402
        %420 = vmatpush.bf16.msra.mxu0 %v411
        %421 = vmatpush.bf16.msra.mxu0 %v410
        %422 = vmatpush.bf16.msra.mxu0 %v409
        %423 = vmatpush.bf16.msra.mxu0 %v408
        %424 = vmatpush.bf16.msra.mxu0 %v407
        %425 = vmatpush.bf16.msra.mxu0 %v406
        %426 = vmatpush.bf16.msra.mxu0 %v405
        %427 = vmatpush.bf16.msra.mxu0 %v404
        %428 = vmatmul.bf16.gmra.mxu0 %v340
        %v429 = vpop.f32.mrf.mxu0
        %v430 = vadd.f32 %v274, %v429
        %v431 = vpop.f32.mrf.mxu0
        %v432 = vadd.f32 %v274, %v431
        %433 = vmatmul.bf16.gmra.mxu0 %v341
        %v434 = vpop.f32.mrf.mxu0
        %v435 = vadd.f32 %v274, %v434
        %v436 = vpop.f32.mrf.mxu0
        %v437 = vadd.f32 %v274, %v436
        %438 = vmatmul.bf16.gmra.mxu0 %v342
        %v439 = vpop.f32.mrf.mxu0
        %v440 = vadd.f32 %v274, %v439
        %v441 = vpop.f32.mrf.mxu0
        %v442 = vadd.f32 %v274, %v441
        %443 = vmatmul.bf16.gmra.mxu0 %v343
        %v444 = vpop.f32.mrf.mxu0
        %v445 = vadd.f32 %v274, %v444
        %v446 = vpop.f32.mrf.mxu0
        %v447 = vadd.f32 %v274, %v446
        %448 = vmatmul.bf16.gmra.mxu0 %v344
        %v449 = vpop.f32.mrf.mxu0
        %v450 = vadd.f32 %v274, %v449
        %v451 = vpop.f32.mrf.mxu0
        %v452 = vadd.f32 %v274, %v451
        %453 = vmatmul.bf16.gmra.mxu0 %v345
        %v454 = vpop.f32.mrf.mxu0
        %v455 = vadd.f32 %v274, %v454
        %v456 = vpop.f32.mrf.mxu0
        %v457 = vadd.f32 %v274, %v456
        %458 = vmatmul.bf16.gmra.mxu0 %v346
        %v459 = vpop.f32.mrf.mxu0
        %v460 = vadd.f32 %v274, %v459
        %v461 = vpop.f32.mrf.mxu0
        %v462 = vadd.f32 %v274, %v461
        %463 = vmatmul.bf16.gmra.mxu0 %v347
        %v464 = vpop.f32.mrf.mxu0
        %v465 = vadd.f32 %v274, %v464
        %v466 = vpop.f32.mrf.mxu0
        %v467 = vadd.f32 %v274, %v466
        %468 = vmatmul.bf16.gmra.mxu0 %v348
        %v469 = vpop.f32.mrf.mxu0
        %v470 = vadd.f32 %v274, %v469
        %v471 = vpop.f32.mrf.mxu0
        %v472 = vadd.f32 %v274, %v471
        %473 = vmatmul.bf16.gmra.mxu0 %v349
        %v474 = vpop.f32.mrf.mxu0
        %v475 = vadd.f32 %v274, %v474
        %v476 = vpop.f32.mrf.mxu0
        %v477 = vadd.f32 %v274, %v476
        %478 = vmatmul.bf16.gmra.mxu0 %v350
        %v479 = vpop.f32.mrf.mxu0
        %v480 = vadd.f32 %v274, %v479
        %v481 = vpop.f32.mrf.mxu0
        %v482 = vadd.f32 %v274, %v481
        %483 = vmatmul.bf16.gmra.mxu0 %v351
        %v484 = vpop.f32.mrf.mxu0
        %v485 = vadd.f32 %v274, %v484
        %v486 = vpop.f32.mrf.mxu0
        %v487 = vadd.f32 %v274, %v486
        %488 = vmatmul.bf16.gmra.mxu0 %v352
        %v489 = vpop.f32.mrf.mxu0
        %v490 = vadd.f32 %v274, %v489
        %v491 = vpop.f32.mrf.mxu0
        %v492 = vadd.f32 %v274, %v491
        %493 = vmatmul.bf16.gmra.mxu0 %v353
        %v494 = vpop.f32.mrf.mxu0
        %v495 = vadd.f32 %v274, %v494
        %v496 = vpop.f32.mrf.mxu0
        %v497 = vadd.f32 %v274, %v496
        %498 = vmatmul.bf16.gmra.mxu0 %v354
        %v499 = vpop.f32.mrf.mxu0
        %v500 = vadd.f32 %v274, %v499
        %v501 = vpop.f32.mrf.mxu0
        %v502 = vadd.f32 %v274, %v501
        %503 = vmatmul.bf16.gmra.mxu0 %v355
        %v504 = vpop.f32.mrf.mxu0
        %v505 = vadd.f32 %v274, %v504
        %v506 = vpop.f32.mrf.mxu0
        %v507 = vadd.f32 %v274, %v506
        %508 = vdwg.mxu0
        %v509 = vmax.f32 %v430, 0.0
        %v510 = vmax.f32 %v432, 0.0
        %v511 = vmax.f32 %v435, 0.0
        %v512 = vmax.f32 %v437, 0.0
        %v513 = vmax.f32 %v440, 0.0
        %v514 = vmax.f32 %v442, 0.0
        %v515 = vmax.f32 %v445, 0.0
        %v516 = vmax.f32 %v447, 0.0
        %v517 = vmax.f32 %v450, 0.0
        %v518 = vmax.f32 %v452, 0.0
        %v519 = vmax.f32 %v455, 0.0
        %v520 = vmax.f32 %v457, 0.0
        %v521 = vmax.f32 %v460, 0.0
        %v522 = vmax.f32 %v462, 0.0
        %v523 = vmax.f32 %v465, 0.0
        %v524 = vmax.f32 %v467, 0.0
        %v525 = vmax.f32 %v470, 0.0
        %v526 = vmax.f32 %v472, 0.0
        %v527 = vmax.f32 %v475, 0.0
        %v528 = vmax.f32 %v477, 0.0
        %v529 = vmax.f32 %v480, 0.0
        %v530 = vmax.f32 %v482, 0.0
        %v531 = vmax.f32 %v485, 0.0
        %v532 = vmax.f32 %v487, 0.0
        %v533 = vmax.f32 %v490, 0.0
        %v534 = vmax.f32 %v492, 0.0
        %v535 = vmax.f32 %v495, 0.0
        %v536 = vmax.f32 %v497, 0.0
        %v537 = vmax.f32 %v500, 0.0
        %v538 = vmax.f32 %v502, 0.0
        %v539 = vmax.f32 %v505, 0.0
        %v540 = vmax.f32 %v507, 0.0
        %v541 = vadd.f32 %v509, %v510
        %v542 = vadd.f32 %v541, %v511
        %v543 = vadd.f32 %v542, %v512
        %v544 = vadd.f32 %v543, %v513
        %v545 = vadd.f32 %v544, %v514
        %v546 = vadd.f32 %v545, %v515
        %v547 = vadd.f32 %v546, %v516
        %v548 = vadd.f32 %v547, %v517
        %v549 = vadd.f32 %v548, %v518
        %v550 = vadd.f32 %v549, %v519
        %v551 = vadd.f32 %v550, %v520
        %v552 = vadd.f32 %v551, %v521
        %v553 = vadd.f32 %v552, %v522
        %v554 = vadd.f32 %v553, %v523
        %v555 = vadd.f32 %v554, %v524
        %v556 = vadd.f32 %v555, %v525
        %v557 = vadd.f32 %v556, %v526
        %v558 = vadd.f32 %v557, %v527
        %v559 = vadd.f32 %v558, %v528
        %v560 = vadd.f32 %v559, %v529
        %v561 = vadd.f32 %v560, %v530
        %v562 = vadd.f32 %v561, %v531
        %v563 = vadd.f32 %v562, %v532
        %v564 = vadd.f32 %v563, %v533
        %v565 = vadd.f32 %v564, %v534
        %v566 = vadd.f32 %v565, %v535
        %v567 = vadd.f32 %v566, %v536
        %v568 = vadd.f32 %v567, %v537
        %v569 = vadd.f32 %v568, %v538
        %v570 = vadd.f32 %v569, %v539
        %v571 = vadd.f32 %v570, %v540
        %v572 = vrot.slane %v571, 4
        %v573 = vadd.f32 %v571, %v572
        %v574 = vrot.slane %v573, 2
        %v575 = vadd.f32 %v573, %v574
        %v576 = vrot.slane %v575, 1
        %v577 = vadd.f32 %v575, %v576
        %v578 = vpack.c.bf16 %v577, %v577
        %v579 = vld [vmem:[%s3] sm:$0xf]
        %v580 = vld [vmem:[%s3 + $0x4] sm:$0xf]
        %v581 = vld [vmem:[%s3 + $0x8] sm:$0xf]
        %v582 = vld [vmem:[%s3 + $0xc] sm:$0xf]
        %v583 = vld [vmem:[%s3 + $0x10] sm:$0xf]
        %v584 = vld [vmem:[%s3 + $0x14] sm:$0xf]
        %v585 = vld [vmem:[%s3 + $0x18] sm:$0xf]
        %v586 = vld [vmem:[%s3 + $0x1c] sm:$0xf]
        %v587 = vld [vmem:[%s3 + $0x20] sm:$0xf]
        %v588 = vld [vmem:[%s3 + $0x24] sm:$0xf]
        %v589 = vld [vmem:[%s3 + $0x28] sm:$0xf]
        %v590 = vld [vmem:[%s3 + $0x2c] sm:$0xf]
        %v591 = vld [vmem:[%s3 + $0x30] sm:$0xf]
        %v592 = vld [vmem:[%s3 + $0x34] sm:$0xf]
        %v593 = vld [vmem:[%s3 + $0x38] sm:$0xf]
        %v594 = vld [vmem:[%s3 + $0x3c] sm:$0xf]
        %v595 = vld [vmem:[%s4] sm:$0x1]
        %v612 = vunpack.c.l.b16 %v579
        %v613 = vunpack.c.l.b16 %v580
        %v614 = vunpack.c.l.b16 %v581
        %v615 = vunpack.c.l.b16 %v582
        %v616 = vunpack.c.l.b16 %v583
        %v617 = vunpack.c.l.b16 %v584
        %v618 = vunpack.c.l.b16 %v585
        %v619 = vunpack.c.l.b16 %v586
        %v620 = vunpack.c.l.b16 %v587
        %v621 = vunpack.c.l.b16 %v588
        %v622 = vunpack.c.l.b16 %v589
        %v623 = vunpack.c.l.b16 %v590
        %v624 = vunpack.c.l.b16 %v591
        %v625 = vunpack.c.l.b16 %v592
        %v626 = vunpack.c.l.b16 %v593
        %v627 = vunpack.c.l.b16 %v594
        %v628 = vpack.c.b16 %v613, %v612
        %v629 = vpack.c.b16 %v615, %v614
        %v630 = vpack.c.b16 %v617, %v616
        %v631 = vpack.c.b16 %v619, %v618
        %v632 = vpack.c.b16 %v621, %v620
        %v633 = vpack.c.b16 %v623, %v622
        %v634 = vpack.c.b16 %v625, %v624
        %v635 = vpack.c.b16 %v627, %v626
        %644 = vmatpush.bf16.msra.mxu0 %v635
        %645 = vmatpush.bf16.msra.mxu0 %v634
        %646 = vmatpush.bf16.msra.mxu0 %v633
        %647 = vmatpush.bf16.msra.mxu0 %v632
        %648 = vmatpush.bf16.msra.mxu0 %v631
        %649 = vmatpush.bf16.msra.mxu0 %v630
        %650 = vmatpush.bf16.msra.mxu0 %v629
        %651 = vmatpush.bf16.msra.mxu0 %v628
        %652 = vmatmul.bf16.gmra.mxu0 %v578
        %v653 = vpop.f32.mrf.mxu0
        %v654 = vadd.f32 %v595, %v653
        %v655 = vpop.f32.mrf.mxu0
        %656 = vdwg.mxu0
        %657 = vst [vmem:[%s217] sm:$0x1] %v654
        %s658 = sand.u32 %s137, 1
        %s659 = scalar_lea.sflag [#allocation3], %s658
        %s660 = sand.u32 %s137, 1
        %s661 = scalar_lea.vmem [#allocation2], %s660
        // Predicated region
        $region41: #{lgr_forward.1} parent=39 // pred_check
          %p662 = pneg %p147
        $region42: #{lgr_forward.1} parent=39 // pred_check_branch
          %664 = sbr.rel (%p662) target = $region44
        $region43: #{lgr_forward.1} parent=39 // pred_region
          %666 = vsyncadd %s659, 0
          %s667 = scalar_lea.hbm %s5, %s19
          %s669 = sshll.u32 %s661, 4
          %s670 = int_to_ptr.vmem [resolvable:$true] %s669
          %s671 = sshll.u32 %s667, 4
          %s672 = int_to_ptr.hbm [resolvable:$true] %s671
          %674 = dma.vmem_to_hbm [thread:$0]  %s670, 16, %s672, %s659
        $region44: #{lgr_forward.1} parent=39 // pred_fallthru
          _
      $region40: #{lgr_forward.1} parent=5 // pred_fallthru
        _
      %p675 = scmp.le.s32.totalorder 2, %s14
      // Predicated region
      $region45: #{lgr_forward.1} parent=5 // pred_check
        %p676 = pneg %p675
      $region46: #{lgr_forward.1} parent=5 // pred_check_branch
        %678 = sbr.rel (%p676) target = $region48
      $region47: #{lgr_forward.1} parent=5 // pred_region
        %s679 = ssub.s32 %s14, 2
        // Predicated region
        $region49: #{lgr_forward.1} parent=47 // pred_check
          %p680 = pneg %p153
        $region50: #{lgr_forward.1} parent=47 // pred_check_branch
          %682 = sbr.rel (%p680) target = $region52
        $region51: #{lgr_forward.1} parent=47 // pred_region
          %s683 = sand.u32 %s138, 1
          %s684 = scalar_lea.sflag [#allocation3], %s683
          %s685 = sand.u32 %s138, 1
          %s686 = scalar_lea.vmem [#allocation2], %s685
          %688 = dma.done %s684, 16
        $region52: #{lgr_forward.1} parent=47 // pred_fallthru
          _
      $region48: #{lgr_forward.1} parent=5 // pred_fallthru
        _
    $region6: #{lgr_forward.1} parent=1 // loop_footer
      %s18 = sadd.s32 1, %s14
    $region7: #{lgr_forward.1} parent=1 // loop_footer_branch
      %13 = sbr.rel target = $region3
    $region8: #{lgr_forward.1} parent=1 // loop_exit
      _
    %689 = vsyncpa [#allocation3], 1
    %s690 = scalar_lea.sflag [#allocation3], 1
    %691 = vsyncpa %s690, 1

</llo_original>
